<compile_context>
chip_gen: v6e
topology: v6e:2x2x1
jax: 0.10.0
libtpu: 0.0.40
codegen_flags: <defaults>
</compile_context>

<pallas_src>
import functools

import jax
import jax.numpy as jnp
from jax.experimental import pallas as pl
from jax.experimental.pallas import tpu as pltpu


def timed_classifier_kernel(
    xin_ref,   # (TB, Kp)  bf16  [x | one-hot(ts) | 0] packed in the wrapper
    w1_ref,    # (Kp, H)   bf16  [W1x ; embed@W1e + b1 ; 0] stacked offline
    w2_ref,    # (H, H)    bf16
    b2_ref,    # (1, H)    f32
    w3_ref,    # (1, H)    f32   fc3 weight as a row (VPU path)
    b3_ref,    # (1, 1)    f32   scalar in SMEM
    out_ref,   # (TB, 1)   f32   logits
):
    # fc1 (+ embedding lookup + b1) as ONE K=Kp bf16 MXU matmul, f32 accum.
    h1 = jnp.dot(xin_ref[...], w1_ref[...], preferred_element_type=jnp.float32)
    h1 = jnp.maximum(h1, 0.0)

    # fc2 + ReLU (bf16 MXU operands, f32 accumulate).
    h2 = (jnp.dot(h1.astype(jnp.bfloat16), w2_ref[...],
                  preferred_element_type=jnp.float32) + b2_ref[...])
    h2 = jnp.maximum(h2, 0.0)

    # fc3 (out_features = 1): VPU multiply + lane reduction instead of a
    # 1-column MXU matmul.  b3 read as a scalar from SMEM.
    out_ref[...] = (jnp.sum(h2 * w3_ref[...], axis=-1, keepdims=True)
                    + b3_ref[0, 0])


def _round_up(n, m):
    return ((n + m - 1) // m) * m


def timed_classifier_forward(x, timesteps, kparams, *, tile_b=1024):
    """x: (B, input_dim) f32, timesteps: (B,) int -> logits (B, 1) f32."""
    B, D = x.shape
    k_pad, H = kparams["w1"].shape
    n_t = kparams["n_timesteps"]
    assert D == kparams["input_dim"] and D + n_t <= k_pad

    # ---- batch tiling: one step for small batches, even balanced tiles for
    # ---- large ones (so the "parallel" axis splits evenly across v7x's TCs).
    if B <= tile_b:
        n_tiles = 1
        tile = _round_up(B, 16)
    else:
        n_tiles = pl.cdiv(B, tile_b)
        if n_tiles % 2:
            n_tiles += 1
        tile = _round_up(pl.cdiv(B, n_tiles), 16)
        n_tiles = pl.cdiv(B, tile)
        if n_tiles % 2:
            n_tiles += 1
    b_pad = tile * n_tiles

    # ---- pack [x | one_hot(ts) | zeros] into one bf16 (b_pad, k_pad) operand.
    onehot = (timesteps.astype(jnp.int32)[:, None]
              == jnp.arange(n_t, dtype=jnp.int32)[None, :]).astype(jnp.bfloat16)
    packed = jnp.zeros((b_pad, k_pad), jnp.bfloat16)
    packed = packed.at[:B, :D].set(x.astype(jnp.bfloat16))
    packed = packed.at[:B, D:D + n_t].set(onehot)

    def batch_spec(shape):
        return pl.BlockSpec(shape, lambda i: (i, 0))

    def const_spec(shape):
        return pl.BlockSpec(shape, lambda i: (0, 0))

    out = pl.pallas_call(
        timed_classifier_kernel,
        out_shape=jax.ShapeDtypeStruct((b_pad, 1), jnp.float32),
        grid=(n_tiles,),
        in_specs=[
            batch_spec((tile, k_pad)),      # packed input (tiled over batch)
            const_spec((k_pad, H)),         # fused fc1 weight (bf16, resident)
            const_spec((H, H)),             # w2 (bf16, resident)
            const_spec((1, H)),             # b2
            const_spec((1, H)),             # w3 row (f32, VPU path)
            pl.BlockSpec((1, 1), lambda i: (0, 0),
                         memory_space=pltpu.MemorySpace.SMEM),  # b3 scalar
        ],
        out_specs=batch_spec((tile, 1)),
        compiler_params=pltpu.CompilerParams(
            dimension_semantics=("parallel",)),
    )(packed, kparams["w1"], kparams["w2"], kparams["b2"],
      kparams["w3row"], kparams["b3"])

    return out[:B]


def init_params(key, input_dim, timestep_embed_dim=64, hidden_dim=256,
                n_timesteps=10):
    """Master f32 params mirroring nn.Linear / nn.Embedding shapes."""
    ks = jax.random.split(key, 7)

    def linear(kw, kb, fan_in, fan_out):
        bound = 1.0 / jnp.sqrt(fan_in)
        w = jax.random.uniform(kw, (fan_in, fan_out), jnp.float32, -bound, bound)
        b = jax.random.uniform(kb, (fan_out,), jnp.float32, -bound, bound)
        return w, b

    embed = jax.random.normal(ks[0], (n_timesteps, timestep_embed_dim),
                              jnp.float32)
    cat_dim = input_dim + timestep_embed_dim
    w1, b1 = linear(ks[1], ks[2], cat_dim, hidden_dim)
    w2, b2 = linear(ks[3], ks[4], hidden_dim, hidden_dim)
    w3, b3 = linear(ks[5], ks[6], hidden_dim, 1)
    return dict(embed=embed, w1=w1, b1=b1, w2=w2, b2=b2, w3=w3, b3=b3)


def prepare_kernel_params(p, input_dim, n_timesteps):
    """Fold embedding projection + b1 into a single stacked fc1 weight."""
    hp = jax.lax.Precision.HIGHEST
    D = input_dim
    H = p["w1"].shape[1]
    w1x = p["w1"][:D]                                  # rows acting on x
    w1e = p["w1"][D:]                                  # rows acting on emb
    emb_w1 = jnp.dot(p["embed"], w1e, precision=hp) + p["b1"][None, :]
    k_pad = _round_up(D + n_timesteps, 128)            # full MXU contraction
    w1_packed = jnp.zeros((k_pad, H), jnp.float32)
    w1_packed = w1_packed.at[:D].set(w1x)
    w1_packed = w1_packed.at[D:D + n_timesteps].set(emb_w1)
    return {
        "w1": w1_packed.astype(jnp.bfloat16),
        "w2": p["w2"].astype(jnp.bfloat16),
        "b2": p["b2"].reshape(1, -1).astype(jnp.float32),
        "w3row": p["w3"].reshape(1, -1).astype(jnp.float32),
        "b3": p["b3"].reshape(1, 1).astype(jnp.float32),
        "input_dim": D,
        "n_timesteps": n_timesteps,
    }


def reference_forward(x, timesteps, p, input_dim):
    """Pure-JAX reference mirroring the kernel's bf16-operand / f32-acc math."""
    hp = jax.lax.Precision.HIGHEST
    b16 = lambda a: a.astype(jnp.bfloat16).astype(jnp.float32)
    w1x = p["w1"][:input_dim]
    w1e = p["w1"][input_dim:]
    emb_w1 = jnp.dot(p["embed"], w1e, precision=hp) + p["b1"][None, :]
    h1 = jnp.maximum(
        jnp.dot(b16(x), b16(w1x), precision=hp) + b16(emb_w1)[timesteps], 0.0)
    h2 = jnp.maximum(
        jnp.dot(b16(h1), b16(p["w2"]), precision=hp) + p["b2"], 0.0)
    return jnp.dot(h2, p["w3"], precision=hp) + p["b3"]


if __name__ == "__main__":
    INPUT_DIM = 32
    EMBED_DIM = 64
    HIDDEN = 256
    N_TIMESTEPS = 10

    key = jax.random.PRNGKey(0)
    k_param, k_x1, k_t1, k_x2, k_t2, k_x3, k_t3 = jax.random.split(key, 7)

    master = init_params(k_param, INPUT_DIM, EMBED_DIM, HIDDEN, N_TIMESTEPS)
    kparams = prepare_kernel_params(master, INPUT_DIM, N_TIMESTEPS)

    fwd = jax.jit(functools.partial(timed_classifier_forward, kparams=kparams))

    # Small batch: single grid step, padding to the 16-row sublane tile.
    x1 = jax.random.normal(k_x1, (8, INPUT_DIM), jnp.float32)
    t1 = jax.random.randint(k_t1, (8,), 0, N_TIMESTEPS, jnp.int32)
    out1 = jax.block_until_ready(fwd(x1, t1))
    ref1 = reference_forward(x1, t1, master, INPUT_DIM)
    assert out1.shape == (8, 1)
    assert jnp.allclose(out1, ref1, atol=5e-3, rtol=5e-3)

    # Medium batch: still one grid step over the whole padded batch (304 rows).
    x2 = jax.random.normal(k_x2, (300, INPUT_DIM), jnp.float32)
    t2 = jax.random.randint(k_t2, (300,), 0, N_TIMESTEPS, jnp.int32)
    out2 = jax.block_until_ready(fwd(x2, t2))
    ref2 = reference_forward(x2, t2, master, INPUT_DIM)
    assert out2.shape == (300, 1)
    assert jnp.allclose(out2, ref2, atol=5e-3, rtol=5e-3)

    # Larger batch: exercises the multi-tile path with an even, balanced tile
    # count (2500 -> 4 tiles of 640) so v7x's two TensorCores split evenly.
    x3 = jax.random.normal(k_x3, (2500, INPUT_DIM), jnp.float32)
    t3 = jax.random.randint(k_t3, (2500,), 0, N_TIMESTEPS, jnp.int32)
    out3 = jax.block_until_ready(fwd(x3, t3))
    ref3 = reference_forward(x3, t3, master, INPUT_DIM)
    assert out3.shape == (2500, 1)
    assert jnp.allclose(out3, ref3, atol=5e-3, rtol=5e-3)

    print("KERNEL_OK")
</pallas_src>

<mosaic_0001>
module attributes {stable_mosaic.version = 11 : i64} {
  func.func @timed_classifier_kernel(%arg0: i32, %arg1: memref<16x128xbf16, #tpu.memory_space<vmem>>, %arg2: memref<128x256xbf16, #tpu.memory_space<vmem>>, %arg3: memref<256x256xbf16, #tpu.memory_space<vmem>>, %arg4: memref<1x256xf32, #tpu.memory_space<vmem>>, %arg5: memref<1x256xf32, #tpu.memory_space<vmem>>, %arg6: memref<1x1xf32, #tpu.memory_space<smem>>, %arg7: memref<16x1xf32, #tpu.memory_space<vmem>>) attributes {dimension_semantics = [#tpu.dimension_semantics<parallel>], iteration_bounds = array<i64: 1>, scalar_prefetch = 0 : i64, scratch_operands = 0 : i64, tpu.core_type = #tpu.core_type<tc>, window_params = [{transform_indices = @transform_0, window_bounds = array<i64: 16, 128>}, {pipeline_mode = #tpu.pipeline_mode<synchronous>, transform_indices = @transform_1, window_bounds = array<i64: 128, 256>}, {pipeline_mode = #tpu.pipeline_mode<synchronous>, transform_indices = @transform_2, window_bounds = array<i64: 256, 256>}, {pipeline_mode = #tpu.pipeline_mode<synchronous>, transform_indices = @transform_3, window_bounds = array<i64: 1, 256>}, {pipeline_mode = #tpu.pipeline_mode<synchronous>, transform_indices = @transform_4, window_bounds = array<i64: 1, 256>}, {transform_indices = @transform_5, window_bounds = array<i64: 1, 1>}, {transform_indices = @transform_6, window_bounds = array<i64: 16, 1>}]} {
    %c0 = arith.constant 0 : index
    %c0_0 = arith.constant 0 : index
    %0 = vector.load %arg1[%c0, %c0_0] : memref<16x128xbf16, #tpu.memory_space<vmem>>, vector<16x128xbf16>
    %c0_1 = arith.constant 0 : index
    %c0_2 = arith.constant 0 : index
    %1 = vector.load %arg2[%c0_1, %c0_2] : memref<128x256xbf16, #tpu.memory_space<vmem>>, vector<128x256xbf16>
    %cst = arith.constant dense<0.000000e+00> : vector<16x256xf32>
    %2 = tpu.matmul %0, %1, %cst {dimension_numbers = #tpu.dot_dimension_numbers<[1], [0], [0], [1], [0, 0, 1, 1], [], []>} : vector<16x128xbf16>, vector<128x256xbf16>, vector<16x256xf32> -> vector<16x256xf32>
    %cst_3 = arith.constant 0.000000e+00 : f32
    %3 = vector.broadcast %cst_3 : f32 to vector<16x256xf32>
    %4 = arith.maximumf %2, %3 : vector<16x256xf32>
    %5 = arith.truncf %4 : vector<16x256xf32> to vector<16x256xbf16>
    %c0_4 = arith.constant 0 : index
    %c0_5 = arith.constant 0 : index
    %6 = vector.load %arg3[%c0_4, %c0_5] : memref<256x256xbf16, #tpu.memory_space<vmem>>, vector<256x256xbf16>
    %cst_6 = arith.constant dense<0.000000e+00> : vector<16x256xf32>
    %7 = tpu.matmul %5, %6, %cst_6 {dimension_numbers = #tpu.dot_dimension_numbers<[1], [0], [0], [1], [0, 0, 1, 1], [], []>} : vector<16x256xbf16>, vector<256x256xbf16>, vector<16x256xf32> -> vector<16x256xf32>
    %c0_7 = arith.constant 0 : index
    %c0_8 = arith.constant 0 : index
    %8 = vector.load %arg4[%c0_7, %c0_8] : memref<1x256xf32, #tpu.memory_space<vmem>>, vector<1x256xf32>
    %9 = vector.broadcast %8 : vector<1x256xf32> to vector<16x256xf32>
    %10 = arith.addf %7, %9 : vector<16x256xf32>
    %cst_9 = arith.constant 0.000000e+00 : f32
    %11 = vector.broadcast %cst_9 : f32 to vector<16x256xf32>
    %12 = arith.maximumf %10, %11 : vector<16x256xf32>
    %c0_10 = arith.constant 0 : index
    %c0_11 = arith.constant 0 : index
    %13 = vector.load %arg5[%c0_10, %c0_11] : memref<1x256xf32, #tpu.memory_space<vmem>>, vector<1x256xf32>
    %14 = vector.broadcast %13 : vector<1x256xf32> to vector<16x256xf32>
    %15 = arith.mulf %12, %14 : vector<16x256xf32>
    %cst_12 = arith.constant dense<0.000000e+00> : vector<16xf32>
    %16 = vector.multi_reduction <add>, %15, %cst_12 [1] : vector<16x256xf32> to vector<16xf32>
    %17 = vector.shape_cast %16 : vector<16xf32> to vector<16x1xf32>
    %c0_13 = arith.constant 0 : index
    %c0_14 = arith.constant 0 : index
    %18 = memref.load %arg6[%c0_13, %c0_14] : memref<1x1xf32, #tpu.memory_space<smem>>
    %19 = vector.broadcast %18 : f32 to vector<16x1xf32>
    %20 = arith.addf %17, %19 : vector<16x1xf32>
    %c0_15 = arith.constant 0 : index
    %c0_16 = arith.constant 0 : index
    %21 = vector.load %arg7[%c0_15, %c0_16] : memref<16x1xf32, #tpu.memory_space<vmem>>, vector<16x1xf32>
    tpu.vector_store %arg7[%c0_15, %c0_16], %20 {strides = array<i32>} : memref<16x1xf32, #tpu.memory_space<vmem>>, vector<16x1xf32>,
    return
  }
  func.func @transform_0(%arg0: i32) -> (i32, i32) {
    %c0_i32 = arith.constant 0 : i32
    %c0_i32_0 = arith.constant 0 : i32
    return %arg0, %c0_i32 : i32, i32
  }
  func.func @transform_1(%arg0: i32) -> (i32, i32) {
    %c0_i32 = arith.constant 0 : i32
    %c0_i32_0 = arith.constant 0 : i32
    %c0_i32_1 = arith.constant 0 : i32
    return %c0_i32, %c0_i32_0 : i32, i32
  }
  func.func @transform_2(%arg0: i32) -> (i32, i32) {
    %c0_i32 = arith.constant 0 : i32
    %c0_i32_0 = arith.constant 0 : i32
    %c0_i32_1 = arith.constant 0 : i32
    return %c0_i32, %c0_i32_0 : i32, i32
  }
  func.func @transform_3(%arg0: i32) -> (i32, i32) {
    %c0_i32 = arith.constant 0 : i32
    %c0_i32_0 = arith.constant 0 : i32
    %c0_i32_1 = arith.constant 0 : i32
    return %c0_i32, %c0_i32_0 : i32, i32
  }
  func.func @transform_4(%arg0: i32) -> (i32, i32) {
    %c0_i32 = arith.constant 0 : i32
    %c0_i32_0 = arith.constant 0 : i32
    %c0_i32_1 = arith.constant 0 : i32
    return %c0_i32, %c0_i32_0 : i32, i32
  }
  func.func @transform_5(%arg0: i32) -> (i32, i32) {
    %c0_i32 = arith.constant 0 : i32
    %c0_i32_0 = arith.constant 0 : i32
    %c0_i32_1 = arith.constant 0 : i32
    return %c0_i32, %c0_i32_0 : i32, i32
  }
  func.func @transform_6(%arg0: i32) -> (i32, i32) {
    %c0_i32 = arith.constant 0 : i32
    %c0_i32_0 = arith.constant 0 : i32
    return %arg0, %c0_i32 : i32, i32
  }
}

</mosaic_0001>

<llo_original>
// kernel: timed_classifier_forward.1
$region0: #{timed_classifier_forward.1}
  #allocation0 [shape = 'u32[]', space=smem, size = 0x4, offset = 0x4, fixed_abs, tag = 'smem constant byte address 0x4 - core index']
  #allocation1 [shape = 'u32[144,128]{1,0:T(1,128)}', space=vmem, size = 0x12000, scoped, tag = 'internal scratch']
  #allocation2 [shape = 'f32[1,1]{1,0:T(1,128)S(6)}', space=smem, size = 0x200, scoped, tag = 'scoped memory for timed_classifier_forward.1']
  %s0 = inlined_call_operand.vmem [shape: bf16[16,128], index: 0, kind: input, shape index: {}]
  %s1 = inlined_call_operand.hbm [shape: bf16[128,256], index: 1, kind: input, shape index: {}]
  %s2 = inlined_call_operand.hbm [shape: bf16[256,256], index: 2, kind: input, shape index: {}]
  %s3 = inlined_call_operand.vmem [shape: f32[1,256], index: 3, kind: input, shape index: {}]
  %s4 = inlined_call_operand.vmem [shape: f32[1,256], index: 4, kind: input, shape index: {}]
  %s5 = inlined_call_operand.<no memory space> [shape: f32[1,1], index: 5, kind: input, shape index: {}]
  %s6 = inlined_call_operand.vmem [shape: f32[16,1], index: 6, kind: output, shape index: {}]
  %s7 = sld [smem:[#allocation0]]
  $region42: #{timed_classifier_forward.1} parent=0
    _
  %s9 = ssub.s32 1, %s7
  %s10 = scalar_select 0, %s9, %s7
  %11 = sst [smem:[#allocation2]] %s5
  $region1: #{timed_classifier_forward.1} parent=0
    #allocation3 [shape = 'u8[65536]{0}', space=vmem, size = 0x10000, scoped, tag = 'input window, operand 1, single buffered']
    #allocation4 [shape = 's32[1]{0}', space=sflag, size = 0x4, scoped, tag = 'scoped memory for timed_classifier_forward.1']
    #allocation5 [shape = 'u8[131072]{0}', space=vmem, size = 0x20000, scoped, tag = 'input window, operand 2, single buffered']
    #allocation6 [shape = 's32[1]{0}', space=sflag, size = 0x4, scoped, tag = 'scoped memory for timed_classifier_forward.1']
    %12 = vsyncpa [#allocation4], 0
    %13 = vsyncpa [#allocation6], 0
    // Predicated region
    $region2: #{timed_classifier_forward.1} parent=1 // pred_check
      _
    $region3: #{timed_classifier_forward.1} parent=1 // pred_check_branch
      %15 = sbr.rel (0) target = $region5
    $region4: #{timed_classifier_forward.1} parent=1 // pred_region
      _
    $region5: #{timed_classifier_forward.1} parent=1 // pred_fallthru
      _
    // Predicated region
    $region6: #{timed_classifier_forward.1} parent=1 // pred_check
      _
    $region7: #{timed_classifier_forward.1} parent=1 // pred_check_branch
      %17 = sbr.rel (0) target = $region9
    $region8: #{timed_classifier_forward.1} parent=1 // pred_region
      %s19 = ssub.s32 2048, 2048
      %20 = vsyncadd [#allocation4], %s19
      %s21 = sshll.u32 [#allocation3], 4
      %s22 = int_to_ptr.vmem [resolvable:$true] %s21
      %27 = dma.hbm_to_vmem [thread:$0]  %s1, 2048, %s22, [#allocation4], 128, 128, 8
    $region9: #{timed_classifier_forward.1} parent=1 // pred_fallthru
      _
    // Predicated region
    $region10: #{timed_classifier_forward.1} parent=1 // pred_check
      _
    $region11: #{timed_classifier_forward.1} parent=1 // pred_check_branch
      %29 = sbr.rel (0) target = $region13
    $region12: #{timed_classifier_forward.1} parent=1 // pred_region
      %s31 = ssub.s32 4096, 4096
      %32 = vsyncadd [#allocation6], %s31
      %s33 = sshll.u32 [#allocation5], 4
      %s34 = int_to_ptr.vmem [resolvable:$true] %s33
      %39 = dma.hbm_to_vmem [thread:$0]  %s2, 4096, %s34, [#allocation6], 128, 128, 8
    $region13: #{timed_classifier_forward.1} parent=1 // pred_fallthru
      _
    // Predicated region
    $region14: #{timed_classifier_forward.1} parent=1 // pred_check
      _
    $region15: #{timed_classifier_forward.1} parent=1 // pred_check_branch
      %41 = sbr.rel (0) target = $region17
    $region16: #{timed_classifier_forward.1} parent=1 // pred_region
      _
    $region17: #{timed_classifier_forward.1} parent=1 // pred_fallthru
      _
    // Predicated region
    $region18: #{timed_classifier_forward.1} parent=1 // pred_check
      _
    $region19: #{timed_classifier_forward.1} parent=1 // pred_check_branch
      %43 = sbr.rel (0) target = $region21
    $region20: #{timed_classifier_forward.1} parent=1 // pred_region
      _
    $region21: #{timed_classifier_forward.1} parent=1 // pred_fallthru
      _
    // Predicated region
    $region22: #{timed_classifier_forward.1} parent=1 // pred_check
      _
    $region23: #{timed_classifier_forward.1} parent=1 // pred_check_branch
      %45 = sbr.rel (0) target = $region25
    $region24: #{timed_classifier_forward.1} parent=1 // pred_region
      _
    $region25: #{timed_classifier_forward.1} parent=1 // pred_fallthru
      _
    // Predicated region
    $region26: #{timed_classifier_forward.1} parent=1 // pred_check
      _
    $region27: #{timed_classifier_forward.1} parent=1 // pred_check_branch
      %47 = sbr.rel (0) target = $region29
    $region28: #{timed_classifier_forward.1} parent=1 // pred_region
      %48 = dma.done [#allocation4], 2048
    $region29: #{timed_classifier_forward.1} parent=1 // pred_fallthru
      _
    // Predicated region
    $region30: #{timed_classifier_forward.1} parent=1 // pred_check
      _
    $region31: #{timed_classifier_forward.1} parent=1 // pred_check_branch
      %50 = sbr.rel (0) target = $region33
    $region32: #{timed_classifier_forward.1} parent=1 // pred_region
      %51 = dma.done [#allocation6], 4096
    $region33: #{timed_classifier_forward.1} parent=1 // pred_fallthru
      _
    %v53 = vld [vmem:[%s0] sm:$0xf]
    %v54 = vld [vmem:[%s0 + $0x4] sm:$0xf]
    %v55 = vld [vmem:[#allocation3] sm:$0xff]
    %v56 = vld [vmem:[#allocation3 + $0x8] sm:$0xff]
    %v57 = vld [vmem:[#allocation3 + $0x10] sm:$0xff]
    %v58 = vld [vmem:[#allocation3 + $0x18] sm:$0xff]
    %v59 = vld [vmem:[#allocation3 + $0x20] sm:$0xff]
    %v60 = vld [vmem:[#allocation3 + $0x28] sm:$0xff]
    %v61 = vld [vmem:[#allocation3 + $0x30] sm:$0xff]
    %v62 = vld [vmem:[#allocation3 + $0x38] sm:$0xff]
    %v63 = vld [vmem:[#allocation3 + $0x40] sm:$0xff]
    %v64 = vld [vmem:[#allocation3 + $0x48] sm:$0xff]
    %v65 = vld [vmem:[#allocation3 + $0x50] sm:$0xff]
    %v66 = vld [vmem:[#allocation3 + $0x58] sm:$0xff]
    %v67 = vld [vmem:[#allocation3 + $0x60] sm:$0xff]
    %v68 = vld [vmem:[#allocation3 + $0x68] sm:$0xff]
    %v69 = vld [vmem:[#allocation3 + $0x70] sm:$0xff]
    %v70 = vld [vmem:[#allocation3 + $0x78] sm:$0xff]
    %v73 = vunpack.c.l.b16 %v53
    %v74 = vunpack.c.l.b16 %v54
    %v75 = vpack.c.b16 %v74, %v73
    %v93 = vunpack.c.l.b16 %v55
    %v94 = vunpack.c.h.b16 %v55
    %v95 = vunpack.c.l.b16 %v56
    %v96 = vunpack.c.h.b16 %v56
    %v97 = vunpack.c.l.b16 %v57
    %v98 = vunpack.c.h.b16 %v57
    %v99 = vunpack.c.l.b16 %v58
    %v100 = vunpack.c.h.b16 %v58
    %v101 = vunpack.c.l.b16 %v59
    %v102 = vunpack.c.h.b16 %v59
    %v103 = vunpack.c.l.b16 %v60
    %v104 = vunpack.c.h.b16 %v60
    %v105 = vunpack.c.l.b16 %v61
    %v106 = vunpack.c.h.b16 %v61
    %v107 = vunpack.c.l.b16 %v62
    %v108 = vunpack.c.h.b16 %v62
    %v109 = vunpack.c.l.b16 %v63
    %v110 = vunpack.c.h.b16 %v63
    %v111 = vunpack.c.l.b16 %v64
    %v112 = vunpack.c.h.b16 %v64
    %v113 = vunpack.c.l.b16 %v65
    %v114 = vunpack.c.h.b16 %v65
    %v115 = vunpack.c.l.b16 %v66
    %v116 = vunpack.c.h.b16 %v66
    %v117 = vunpack.c.l.b16 %v67
    %v118 = vunpack.c.h.b16 %v67
    %v119 = vunpack.c.l.b16 %v68
    %v120 = vunpack.c.h.b16 %v68
    %v121 = vunpack.c.l.b16 %v69
    %v122 = vunpack.c.h.b16 %v69
    %v123 = vunpack.c.l.b16 %v70
    %v124 = vunpack.c.h.b16 %v70
    %v125 = vpack.c.b16 %v95, %v93
    %v126 = vpack.c.b16 %v96, %v94
    %v127 = vpack.c.b16 %v99, %v97
    %v128 = vpack.c.b16 %v100, %v98
    %v129 = vpack.c.b16 %v103, %v101
    %v130 = vpack.c.b16 %v104, %v102
    %v131 = vpack.c.b16 %v107, %v105
    %v132 = vpack.c.b16 %v108, %v106
    %v133 = vpack.c.b16 %v111, %v109
    %v134 = vpack.c.b16 %v112, %v110
    %v135 = vpack.c.b16 %v115, %v113
    %v136 = vpack.c.b16 %v116, %v114
    %v137 = vpack.c.b16 %v119, %v117
    %v138 = vpack.c.b16 %v120, %v118
    %v139 = vpack.c.b16 %v123, %v121
    %v140 = vpack.c.b16 %v124, %v122
    %157 = vmatprep.subr.bf16.mxu0 %v140
    %158 = vmatpush1.bf16.msra.mxu0 %v139
    %159 = vmatprep.subr.bf16.mxu0 %v138
    %160 = vmatpush1.bf16.msra.mxu0 %v137
    %161 = vmatprep.subr.bf16.mxu0 %v136
    %162 = vmatpush1.bf16.msra.mxu0 %v135
    %163 = vmatprep.subr.bf16.mxu0 %v134
    %164 = vmatpush1.bf16.msra.mxu0 %v133
    %165 = vmatprep.subr.bf16.mxu0 %v132
    %166 = vmatpush1.bf16.msra.mxu0 %v131
    %167 = vmatprep.subr.bf16.mxu0 %v130
    %168 = vmatpush1.bf16.msra.mxu0 %v129
    %169 = vmatprep.subr.bf16.mxu0 %v128
    %170 = vmatpush1.bf16.msra.mxu0 %v127
    %171 = vmatprep.subr.bf16.mxu0 %v126
    %172 = vmatpush1.bf16.msra.mxu0 %v125
    %173 = vmatprep.subr.bf16.mxu0 0
    %174 = vmatpush2.bf16.msra.mxu0 0
    %175 = vmatprep.subr.bf16.mxu0 0
    %176 = vmatpush2.bf16.msra.mxu0 0
    %177 = vmatprep.subr.bf16.mxu0 0
    %178 = vmatpush2.bf16.msra.mxu0 0
    %179 = vmatprep.subr.bf16.mxu0 0
    %180 = vmatpush2.bf16.msra.mxu0 0
    %181 = vmatprep.subr.bf16.mxu0 0
    %182 = vmatpush2.bf16.msra.mxu0 0
    %183 = vmatprep.subr.bf16.mxu0 0
    %184 = vmatpush2.bf16.msra.mxu0 0
    %185 = vmatprep.subr.bf16.mxu0 0
    %186 = vmatpush2.bf16.msra.mxu0 0
    %187 = vmatprep.subr.bf16.mxu0 0
    %188 = vmatpush2.bf16.msra.mxu0 0
    %189 = vmatprep.mubr.bf16.mxu0 0
    %190 = vmatmul.mubr.bf16.gmra.mxu0 %v75
    %v191 = vpop.f32.mrf.mxu0
    %v192 = vadd.f32 0.0, %v191
    %v193 = vpop.f32.mrf.mxu0
    %v194 = vadd.f32 0.0, %v193
    %v195 = vpop.f32.mrf.mxu0
    %v196 = vadd.f32 0.0, %v195
    %v197 = vpop.f32.mrf.mxu0
    %v198 = vadd.f32 0.0, %v197
    %199 = vdwg.mxu0
    %v200 = vmax.f32 %v192, 0.0
    %v201 = vmax.f32 %v194, 0.0
    %v202 = vmax.f32 %v196, 0.0
    %v203 = vmax.f32 %v198, 0.0
    %v204 = vpack.c.bf16 %v202, %v200
    %v205 = vpack.c.bf16 %v203, %v201
    %v206 = vld [vmem:[#allocation5] sm:$0xff]
    %v207 = vld [vmem:[#allocation5 + $0x8] sm:$0xff]
    %v208 = vld [vmem:[#allocation5 + $0x10] sm:$0xff]
    %v209 = vld [vmem:[#allocation5 + $0x18] sm:$0xff]
    %v210 = vld [vmem:[#allocation5 + $0x20] sm:$0xff]
    %v211 = vld [vmem:[#allocation5 + $0x28] sm:$0xff]
    %v212 = vld [vmem:[#allocation5 + $0x30] sm:$0xff]
    %v213 = vld [vmem:[#allocation5 + $0x38] sm:$0xff]
    %v214 = vld [vmem:[#allocation5 + $0x40] sm:$0xff]
    %v215 = vld [vmem:[#allocation5 + $0x48] sm:$0xff]
    %v216 = vld [vmem:[#allocation5 + $0x50] sm:$0xff]
    %v217 = vld [vmem:[#allocation5 + $0x58] sm:$0xff]
    %v218 = vld [vmem:[#allocation5 + $0x60] sm:$0xff]
    %v219 = vld [vmem:[#allocation5 + $0x68] sm:$0xff]
    %v220 = vld [vmem:[#allocation5 + $0x70] sm:$0xff]
    %v221 = vld [vmem:[#allocation5 + $0x78] sm:$0xff]
    %v222 = vld [vmem:[#allocation5 + $0x80] sm:$0xff]
    %v223 = vld [vmem:[#allocation5 + $0x88] sm:$0xff]
    %v224 = vld [vmem:[#allocation5 + $0x90] sm:$0xff]
    %v225 = vld [vmem:[#allocation5 + $0x98] sm:$0xff]
    %v226 = vld [vmem:[#allocation5 + $0xa0] sm:$0xff]
    %v227 = vld [vmem:[#allocation5 + $0xa8] sm:$0xff]
    %v228 = vld [vmem:[#allocation5 + $0xb0] sm:$0xff]
    %v229 = vld [vmem:[#allocation5 + $0xb8] sm:$0xff]
    %v230 = vld [vmem:[#allocation5 + $0xc0] sm:$0xff]
    %v231 = vld [vmem:[#allocation5 + $0xc8] sm:$0xff]
    %v232 = vld [vmem:[#allocation5 + $0xd0] sm:$0xff]
    %v233 = vld [vmem:[#allocation5 + $0xd8] sm:$0xff]
    %v234 = vld [vmem:[#allocation5 + $0xe0] sm:$0xff]
    %v235 = vld [vmem:[#allocation5 + $0xe8] sm:$0xff]
    %v236 = vld [vmem:[#allocation5 + $0xf0] sm:$0xff]
    %v237 = vld [vmem:[#allocation5 + $0xf8] sm:$0xff]
    %v238 = vld [vmem:[%s3] sm:$0x3]
    %v240 = vlaneseq
    %v241 = vshrl.u32 %v240, 7
    %v242 = vsub.s32 0, %v241
    %v243 = vrot.slane %v238, %v242
    %v244 = vlaneseq
    %v245 = vshrl.u32 %v244, 7
    %v246 = vsub.s32 1, %v245
    %v247 = vrot.slane %v238, %v246
    %v282 = vunpack.c.l.b16 %v206
    %v283 = vunpack.c.h.b16 %v206
    %v284 = vunpack.c.l.b16 %v207
    %v285 = vunpack.c.h.b16 %v207
    %v286 = vunpack.c.l.b16 %v208
    %v287 = vunpack.c.h.b16 %v208
    %v288 = vunpack.c.l.b16 %v209
    %v289 = vunpack.c.h.b16 %v209
    %v290 = vunpack.c.l.b16 %v210
    %v291 = vunpack.c.h.b16 %v210
    %v292 = vunpack.c.l.b16 %v211
    %v293 = vunpack.c.h.b16 %v211
    %v294 = vunpack.c.l.b16 %v212
    %v295 = vunpack.c.h.b16 %v212
    %v296 = vunpack.c.l.b16 %v213
    %v297 = vunpack.c.h.b16 %v213
    %v298 = vunpack.c.l.b16 %v214
    %v299 = vunpack.c.h.b16 %v214
    %v300 = vunpack.c.l.b16 %v215
    %v301 = vunpack.c.h.b16 %v215
    %v302 = vunpack.c.l.b16 %v216
    %v303 = vunpack.c.h.b16 %v216
    %v304 = vunpack.c.l.b16 %v217
    %v305 = vunpack.c.h.b16 %v217
    %v306 = vunpack.c.l.b16 %v218
    %v307 = vunpack.c.h.b16 %v218
    %v308 = vunpack.c.l.b16 %v219
    %v309 = vunpack.c.h.b16 %v219
    %v310 = vunpack.c.l.b16 %v220
    %v311 = vunpack.c.h.b16 %v220
    %v312 = vunpack.c.l.b16 %v221
    %v313 = vunpack.c.h.b16 %v221
    %v314 = vunpack.c.l.b16 %v222
    %v315 = vunpack.c.h.b16 %v222
    %v316 = vunpack.c.l.b16 %v223
    %v317 = vunpack.c.h.b16 %v223
    %v318 = vunpack.c.l.b16 %v224
    %v319 = vunpack.c.h.b16 %v224
    %v320 = vunpack.c.l.b16 %v225
    %v321 = vunpack.c.h.b16 %v225
    %v322 = vunpack.c.l.b16 %v226
    %v323 = vunpack.c.h.b16 %v226
    %v324 = vunpack.c.l.b16 %v227
    %v325 = vunpack.c.h.b16 %v227
    %v326 = vunpack.c.l.b16 %v228
    %v327 = vunpack.c.h.b16 %v228
    %v328 = vunpack.c.l.b16 %v229
    %v329 = vunpack.c.h.b16 %v229
    %v330 = vunpack.c.l.b16 %v230
    %v331 = vunpack.c.h.b16 %v230
    %v332 = vunpack.c.l.b16 %v231
    %v333 = vunpack.c.h.b16 %v231
    %v334 = vunpack.c.l.b16 %v232
    %v335 = vunpack.c.h.b16 %v232
    %v336 = vunpack.c.l.b16 %v233
    %v337 = vunpack.c.h.b16 %v233
    %v338 = vunpack.c.l.b16 %v234
    %v339 = vunpack.c.h.b16 %v234
    %v340 = vunpack.c.l.b16 %v235
    %v341 = vunpack.c.h.b16 %v235
    %v342 = vunpack.c.l.b16 %v236
    %v343 = vunpack.c.h.b16 %v236
    %v344 = vunpack.c.l.b16 %v237
    %v345 = vunpack.c.h.b16 %v237
    %v346 = vpack.c.b16 %v284, %v282
    %v347 = vpack.c.b16 %v285, %v283
    %v348 = vpack.c.b16 %v288, %v286
    %v349 = vpack.c.b16 %v289, %v287
    %v350 = vpack.c.b16 %v292, %v290
    %v351 = vpack.c.b16 %v293, %v291
    %v352 = vpack.c.b16 %v296, %v294
    %v353 = vpack.c.b16 %v297, %v295
    %v354 = vpack.c.b16 %v300, %v298
    %v355 = vpack.c.b16 %v301, %v299
    %v356 = vpack.c.b16 %v304, %v302
    %v357 = vpack.c.b16 %v305, %v303
    %v358 = vpack.c.b16 %v308, %v306
    %v359 = vpack.c.b16 %v309, %v307
    %v360 = vpack.c.b16 %v312, %v310
    %v361 = vpack.c.b16 %v313, %v311
    %v362 = vpack.c.b16 %v316, %v314
    %v363 = vpack.c.b16 %v317, %v315
    %v364 = vpack.c.b16 %v320, %v318
    %v365 = vpack.c.b16 %v321, %v319
    %v366 = vpack.c.b16 %v324, %v322
    %v367 = vpack.c.b16 %v325, %v323
    %v368 = vpack.c.b16 %v328, %v326
    %v369 = vpack.c.b16 %v329, %v327
    %v370 = vpack.c.b16 %v332, %v330
    %v371 = vpack.c.b16 %v333, %v331
    %v372 = vpack.c.b16 %v336, %v334
    %v373 = vpack.c.b16 %v337, %v335
    %v374 = vpack.c.b16 %v340, %v338
    %v375 = vpack.c.b16 %v341, %v339
    %v376 = vpack.c.b16 %v344, %v342
    %v377 = vpack.c.b16 %v345, %v343
    %410 = vmatprep.subr.bf16.mxu0 %v361
    %411 = vmatpush1.bf16.msra.mxu0 %v360
    %412 = vmatprep.subr.bf16.mxu0 %v359
    %413 = vmatpush1.bf16.msra.mxu0 %v358
    %414 = vmatprep.subr.bf16.mxu0 %v357
    %415 = vmatpush1.bf16.msra.mxu0 %v356
    %416 = vmatprep.subr.bf16.mxu0 %v355
    %417 = vmatpush1.bf16.msra.mxu0 %v354
    %418 = vmatprep.subr.bf16.mxu0 %v353
    %419 = vmatpush1.bf16.msra.mxu0 %v352
    %420 = vmatprep.subr.bf16.mxu0 %v351
    %421 = vmatpush1.bf16.msra.mxu0 %v350
    %422 = vmatprep.subr.bf16.mxu0 %v349
    %423 = vmatpush1.bf16.msra.mxu0 %v348
    %424 = vmatprep.subr.bf16.mxu0 %v347
    %425 = vmatpush1.bf16.msra.mxu0 %v346
    %426 = vmatprep.subr.bf16.mxu0 %v377
    %427 = vmatpush2.bf16.msra.mxu0 %v376
    %428 = vmatprep.subr.bf16.mxu0 %v375
    %429 = vmatpush2.bf16.msra.mxu0 %v374
    %430 = vmatprep.subr.bf16.mxu0 %v373
    %431 = vmatpush2.bf16.msra.mxu0 %v372
    %432 = vmatprep.subr.bf16.mxu0 %v371
    %433 = vmatpush2.bf16.msra.mxu0 %v370
    %434 = vmatprep.subr.bf16.mxu0 %v369
    %435 = vmatpush2.bf16.msra.mxu0 %v368
    %436 = vmatprep.subr.bf16.mxu0 %v367
    %437 = vmatpush2.bf16.msra.mxu0 %v366
    %438 = vmatprep.subr.bf16.mxu0 %v365
    %439 = vmatpush2.bf16.msra.mxu0 %v364
    %440 = vmatprep.subr.bf16.mxu0 %v363
    %441 = vmatpush2.bf16.msra.mxu0 %v362
    %442 = vmatprep.mubr.bf16.mxu0 %v205
    %443 = vmatmul.mubr.bf16.gmra.mxu0 %v204
    %v444 = vpop.f32.mrf.mxu0
    %v445 = vadd.f32 %v243, %v444
    %v446 = vpop.f32.mrf.mxu0
    %v447 = vadd.f32 %v247, %v446
    %v448 = vpop.f32.mrf.mxu0
    %v449 = vadd.f32 %v243, %v448
    %v450 = vpop.f32.mrf.mxu0
    %v451 = vadd.f32 %v247, %v450
    %452 = vdwg.mxu0
    %v453 = vmax.f32 %v445, 0.0
    %v454 = vmax.f32 %v447, 0.0
    %v455 = vmax.f32 %v449, 0.0
    %v456 = vmax.f32 %v451, 0.0
    %v457 = vld [vmem:[%s4] sm:$0x3]
    %v459 = vlaneseq
    %v460 = vshrl.u32 %v459, 7
    %v461 = vsub.s32 0, %v460
    %v462 = vrot.slane %v457, %v461
    %v463 = vlaneseq
    %v464 = vshrl.u32 %v463, 7
    %v465 = vsub.s32 1, %v464
    %v466 = vrot.slane %v457, %v465
    %v469 = vmul.f32 %v453, %v462
    %v470 = vmul.f32 %v454, %v466
    %v471 = vmul.f32 %v455, %v462
    %v472 = vmul.f32 %v456, %v466
    %v473 = vadd.f32 %v469, %v470
    %474 = vadd.xlane.f32.xlu0 %v473
    %v475 = vpop.xlane.xlu0 %474
    %v476 = vadd.f32 %v471, %v472
    %477 = vadd.xlane.f32.xlu0 %v476
    %v478 = vpop.xlane.xlu0 %477
    %s479 = sld [smem:[#allocation2]]
    %v480 = vstv %s479
    %v481 = vadd.f32 %v475, %v480
    %v482 = vadd.f32 %v478, %v480
    %vm483 = vcmask 7168
    %484 = vst.msk [vmem:[%s6] sm:$0xff] %vm483, %v481
    %485 = vst.msk [vmem:[%s6 + $0x8] sm:$0xff] %vm483, %v482
    // Predicated region
    $region34: #{timed_classifier_forward.1} parent=1 // pred_check
      _
    $region35: #{timed_classifier_forward.1} parent=1 // pred_check_branch
      %487 = sbr.rel (0) target = $region37
    $region36: #{timed_classifier_forward.1} parent=1 // pred_region
      _
    $region37: #{timed_classifier_forward.1} parent=1 // pred_fallthru
      _
    // Predicated region
    $region38: #{timed_classifier_forward.1} parent=1 // pred_check
      _
    $region39: #{timed_classifier_forward.1} parent=1 // pred_check_branch
      %489 = sbr.rel (0) target = $region41
    $region40: #{timed_classifier_forward.1} parent=1 // pred_region
      _
    $region41: #{timed_classifier_forward.1} parent=1 // pred_fallthru
      _
    %490 = vsyncpa [#allocation4], 1
    %491 = vsyncpa [#allocation6], 1

</llo_original>
